<compile_context>
chip_gen: v7x
topology: tpu7x:2x2x1
jax: 0.10.0
libtpu: 0.0.40
codegen_flags: <defaults>
</compile_context>

<pallas_src>
import jax
import jax.numpy as jnp
from jax.experimental import pallas as pl
from jax.experimental.pallas import tpu as pltpu


# ----------------------------- Pallas kernel ------------------------------- #
def _linear_t_kernel(wt_ref, x_ref, b_ref, o_ref):
    # wt: (D, C) full weight^T, x: (C, tn) sample tile, b: (D, 1) -> o: (D, tn)
    acc = jnp.dot(wt_ref[...], x_ref[...], preferred_element_type=jnp.float32)
    o_ref[...] = (acc + b_ref[...].astype(jnp.float32)).astype(o_ref.dtype)


def pallas_linear_t(x_t, w, b, *, tn=512, compute_dtype=None, out_dtype=None):
    """y^T = W^T @ x^T + b  with x_t:(C, M) (samples on lanes), w:(C, D), b:(D,).

    Returns (D, M). Samples stay on the lane axis end to end.
    """
    C, M = x_t.shape
    Cw, D = w.shape
    assert Cw == C
    out_dtype = out_dtype or x_t.dtype
    wt = jnp.transpose(w)                       # (D, C): one-time tiny transpose
    if compute_dtype is not None:               # e.g. jnp.bfloat16 on v6e / v7x
        x_t = x_t.astype(compute_dtype)
        wt = wt.astype(compute_dtype)

    # Tile the sample (lane) axis. Either one full-extent block (always a legal
    # block shape) or 128-multiple tiles with a masked partial tail — no
    # host-side padding and no trailing slice (both were extra HBM passes).
    if M <= tn:
        tn_eff, grid = M, 1
    else:
        tn_eff, grid = tn, pl.cdiv(M, tn)       # tn is a multiple of 128

    return pl.pallas_call(
        _linear_t_kernel,
        out_shape=jax.ShapeDtypeStruct((D, M), out_dtype),
        grid_spec=pltpu.PrefetchScalarGridSpec(
            num_scalar_prefetch=0,
            grid=(grid,),
            in_specs=[
                pl.BlockSpec((D, C), lambda j: (0, 0)),        # full weight^T
                pl.BlockSpec((C, tn_eff), lambda j: (0, j)),   # sample tile of x^T
                pl.BlockSpec((D, 1), lambda j: (0, 0)),        # bias (lane broadcast)
            ],
            out_specs=pl.BlockSpec((D, tn_eff), lambda j: (0, j)),
        ),
        compiler_params=pltpu.CompilerParams(
            dimension_semantics=("parallel",)),                # >=2 steps -> both v7x TCs
    )(wt, x_t, b.reshape(D, 1))


# --------------------------- module forward pass ---------------------------- #
def hyper_emb_decoder_forward(params, feat_img_0, feat_img_1, feats_P,
                              p2i_list_0, indices, *, compute_dtype=None):
    """Matches Hyper_Emb_Decoder.forward + Hyper_Embedding.from_zZ:
       returns [(center_src, offset_src), (center_tgt, offset_tgt)]
         center: (B, K, D)
         offset: (B, K, 2, D) == stack((min_offset, max_offset), -2)
       (from_zZ only stacks the two halves; no elementwise min/max is applied.)
    """
    W, b = params["weight"], params["bias"]          # W: (C, D) == fc.weight.T
    B, C, H, Wd = feat_img_0.shape
    HW = H * Wd
    D = W.shape[1]
    K = indices.shape[0]

    # ---- hoist the `indices` sampling in front of the linear ----
    # image branch: NCHW kept as (B, C, HW); gather only the K sampled pixels.
    img_src = feat_img_0.reshape(B, C, HW)[:, :, indices]        # (B, C, K)
    img_tgt = feat_img_1.reshape(B, C, HW)[:, :, indices]
    x_img_src = jnp.transpose(img_src, (1, 0, 2)).reshape(C, B * K)
    x_img_tgt = jnp.transpose(img_tgt, (1, 0, 2)).reshape(C, B * K)

    # point branch: sample the p2i index table first, then gather feature rows.
    feats_P_ext = jnp.concatenate(
        [feats_P, jnp.zeros((1, feats_P.shape[1]), feats_P.dtype)], axis=0)
    p2i = jnp.reshape(p2i_list_0, (2 * B, HW))                   # chunk i = row i
    p2i_src = p2i[0::2][:, indices]                              # (B, K) even chunks -> src
    p2i_tgt = p2i[1::2][:, indices]                              # (B, K) odd  chunks -> tgt
    pnt_src = feats_P_ext[p2i_src]                               # (B, K, C)
    pnt_tgt = feats_P_ext[p2i_tgt]
    x_pnt_src = jnp.transpose(pnt_src, (2, 0, 1)).reshape(C, B * K)
    x_pnt_tgt = jnp.transpose(pnt_tgt, (2, 0, 1)).reshape(C, B * K)

    # ---- one fused linear over all four branches (shared W, b) ----
    x_all = jnp.concatenate(
        [x_img_src, x_img_tgt, x_pnt_src, x_pnt_tgt], axis=1)    # (C, 4*B*K)
    y_all = pallas_linear_t(x_all, W, b, compute_dtype=compute_dtype,
                            out_dtype=feat_img_0.dtype)          # (D, 4*B*K)

    y = jnp.transpose(y_all.reshape(D, 4, B, K), (1, 2, 3, 0))   # (4, B, K, D)
    fI_src, fI_tgt, fP_src, fP_tgt = y[0], y[1], y[2], y[3]

    # Hyper_Embedding.from_zZ: center = sampled image feats,
    # offset = stack((left_bottom, right_top), -2) = stack((image half, point half), -2)
    off_src = jnp.stack([fI_src, fP_src], axis=-2)               # (B, K, 2, D)
    off_tgt = jnp.stack([fI_tgt, fP_tgt], axis=-2)
    # TODO(synk): the PyTorch module wraps these in Hyper_Embedding (nn.Parameter);
    # here they are returned as plain (center, offset) arrays.
    return [(fI_src, off_src), (fI_tgt, off_tgt)]


# --------------------------------- driver ----------------------------------- #
if __name__ == "__main__":
    # small shapes consistent with the module
    B, C, H, Wd = 2, 4, 8, 8          # input_dim = C
    D = 16                            # output_dim
    N_points = 20
    K_sample = 8
    HW = H * Wd

    key = jax.random.PRNGKey(0)
    k0, k1, k2, k3, k4, k5, k6 = jax.random.split(key, 7)

    feat_img_0 = jax.random.normal(k0, (B, C, H, Wd), jnp.float32)
    feat_img_1 = jax.random.normal(k1, (B, C, H, Wd), jnp.float32)
    feats_P = jax.random.normal(k2, (N_points, C), jnp.float32)
    # p2i indices in [0, N_points]; index == N_points selects the appended zero row
    p2i_list_0 = jax.random.randint(k3, (2 * B * HW, 1), 0, N_points + 1, jnp.int32)
    indices = jax.random.permutation(k4, HW)[:K_sample]

    # deterministic nn.Linear(input_dim, output_dim) init (U(-1/sqrt(C), 1/sqrt(C)))
    bound = 1.0 / (C ** 0.5)
    W_fc = jax.random.uniform(k5, (C, D), jnp.float32, -bound, bound)   # == fc.weight.T
    b_fc = jax.random.uniform(k6, (D,), jnp.float32, -bound, bound)
    params = {"weight": W_fc, "bias": b_fc}

    out = hyper_emb_decoder_forward(params, feat_img_0, feat_img_1, feats_P,
                                    p2i_list_0, indices)
    jax.block_until_ready(out)

    # reference: the original "compute everything, then sample" path in plain jnp
    def ref_forward():
        fI_s = feat_img_0.reshape(B, C, HW).transpose(0, 2, 1) @ W_fc + b_fc
        fI_t = feat_img_1.reshape(B, C, HW).transpose(0, 2, 1) @ W_fc + b_fc
        fPext = jnp.concatenate([feats_P, jnp.zeros((1, C), jnp.float32)], 0)
        fp2i = (fPext[jnp.squeeze(p2i_list_0)] @ W_fc + b_fc).reshape(2 * B, HW, D)
        fp_s = jnp.concatenate([fI_s, fp2i[0::2]], axis=2)
        fp_t = jnp.concatenate([fI_t, fp2i[1::2]], axis=2)
        sI_s, sI_t = fI_s[:, indices], fI_t[:, indices]
        sp_s, sp_t = fp_s[:, indices], fp_t[:, indices]
        o_s = jnp.stack([sp_s[..., :D], sp_s[..., D:]], axis=-2)
        o_t = jnp.stack([sp_t[..., :D], sp_t[..., D:]], axis=-2)
        return [(sI_s, o_s), (sI_t, o_t)]

    ref = ref_forward()
    for (c, o), (cr, orr) in zip(out, ref):
        assert c.shape == (B, K_sample, D)
        assert o.shape == (B, K_sample, 2, D)
        assert jnp.allclose(c, cr, atol=1e-5), "center mismatch"
        assert jnp.allclose(o, orr, atol=1e-5), "offset mismatch"

    print("KERNEL_OK")
</pallas_src>

<mosaic_0001>
module attributes {stable_mosaic.version = 11 : i64} {
  func.func @_linear_t_kernel(%arg0: i32, %arg1: memref<16x4xf32, #tpu.memory_space<vmem>>, %arg2: memref<4x64xf32, #tpu.memory_space<vmem>>, %arg3: memref<16x1xf32, #tpu.memory_space<vmem>>, %arg4: memref<16x64xf32, #tpu.memory_space<vmem>>) attributes {dimension_semantics = [#tpu.dimension_semantics<parallel>], iteration_bounds = array<i64: 1>, scalar_prefetch = 0 : i64, scratch_operands = 0 : i64, tpu.core_type = #tpu.core_type<tc>, window_params = [{pipeline_mode = #tpu.pipeline_mode<synchronous>, transform_indices = @transform_0, window_bounds = array<i64: 16, 4>}, {transform_indices = @transform_1, window_bounds = array<i64: 4, 64>}, {pipeline_mode = #tpu.pipeline_mode<synchronous>, transform_indices = @transform_2, window_bounds = array<i64: 16, 1>}, {transform_indices = @transform_3, window_bounds = array<i64: 16, 64>}]} {
    %c0 = arith.constant 0 : index
    %c0_0 = arith.constant 0 : index
    %0 = vector.load %arg1[%c0, %c0_0] : memref<16x4xf32, #tpu.memory_space<vmem>>, vector<16x4xf32>
    %c0_1 = arith.constant 0 : index
    %c0_2 = arith.constant 0 : index
    %1 = vector.load %arg2[%c0_1, %c0_2] : memref<4x64xf32, #tpu.memory_space<vmem>>, vector<4x64xf32>
    %cst = arith.constant dense<0.000000e+00> : vector<16x64xf32>
    %2 = tpu.matmul %0, %1, %cst {dimension_numbers = #tpu.dot_dimension_numbers<[1], [0], [0], [1], [0, 0, 1, 1], [], []>} : vector<16x4xf32>, vector<4x64xf32>, vector<16x64xf32> -> vector<16x64xf32>
    %c0_3 = arith.constant 0 : index
    %c0_4 = arith.constant 0 : index
    %3 = vector.load %arg3[%c0_3, %c0_4] : memref<16x1xf32, #tpu.memory_space<vmem>>, vector<16x1xf32>
    %4 = vector.broadcast %3 : vector<16x1xf32> to vector<16x64xf32>
    %5 = arith.addf %2, %4 : vector<16x64xf32>
    %c0_5 = arith.constant 0 : index
    %c0_6 = arith.constant 0 : index
    %6 = vector.load %arg4[%c0_5, %c0_6] : memref<16x64xf32, #tpu.memory_space<vmem>>, vector<16x64xf32>
    tpu.vector_store %arg4[%c0_5, %c0_6], %5 {strides = array<i32>} : memref<16x64xf32, #tpu.memory_space<vmem>>, vector<16x64xf32>,
    return
  }
  func.func @transform_0(%arg0: i32) -> (i32, i32) {
    %c0_i32 = arith.constant 0 : i32
    %c0_i32_0 = arith.constant 0 : i32
    %c0_i32_1 = arith.constant 0 : i32
    return %c0_i32, %c0_i32_0 : i32, i32
  }
  func.func @transform_1(%arg0: i32) -> (i32, i32) {
    %c0_i32 = arith.constant 0 : i32
    %c0_i32_0 = arith.constant 0 : i32
    return %c0_i32, %arg0 : i32, i32
  }
  func.func @transform_2(%arg0: i32) -> (i32, i32) {
    %c0_i32 = arith.constant 0 : i32
    %c0_i32_0 = arith.constant 0 : i32
    %c0_i32_1 = arith.constant 0 : i32
    return %c0_i32, %c0_i32_0 : i32, i32
  }
  func.func @transform_3(%arg0: i32) -> (i32, i32) {
    %c0_i32 = arith.constant 0 : i32
    %c0_i32_0 = arith.constant 0 : i32
    return %c0_i32, %arg0 : i32, i32
  }
}

</mosaic_0001>

<llo_original>
// kernel: tpu_custom_call.1
$region0: #{tpu_custom_call.1}
  #allocation0 [shape = 'u32[]', space=smem, size = 0x4, offset = 0x4, fixed_abs, tag = 'smem constant byte address 0x4 - core index']
  #allocation1 [shape = 'u32[144,128]{1,0:T(1,128)}', space=vmem, size = 0x12000, scoped, tag = 'internal scratch']
  %s0 = inlined_call_operand.vmem [shape: f32[16,4], index: 0, kind: input, shape index: {}]
  %s1 = inlined_call_operand.vmem [shape: f32[4,64], index: 1, kind: input, shape index: {}]
  %s2 = inlined_call_operand.vmem [shape: f32[16,1], index: 2, kind: input, shape index: {}]
  %s3 = inlined_call_operand.hbm [shape: f32[16,64], index: 3, kind: output, shape index: {}]
  %s4 = sld [smem:[#allocation0]]
  $region22: #{tpu_custom_call.1} parent=0
    _
  %s6 = ssub.s32 1, %s4
  %s7 = scalar_select 0, %s6, %s4
  $region1: #{tpu_custom_call.1} parent=0
    #allocation2 [shape = 'u8[8192]{0}', space=vmem, size = 0x2000, scoped, tag = 'output window, operand 0, single buffered']
    #allocation3 [shape = 's32[1]{0}', space=sflag, size = 0x4, scoped, tag = 'scoped memory for tpu_custom_call.1']
    %8 = vsyncpa [#allocation3], 0
    // Predicated region
    $region2: #{tpu_custom_call.1} parent=1 // pred_check
      _
    $region3: #{tpu_custom_call.1} parent=1 // pred_check_branch
      %10 = sbr.rel (0) target = $region5
    $region4: #{tpu_custom_call.1} parent=1 // pred_region
      _
    $region5: #{tpu_custom_call.1} parent=1 // pred_fallthru
      _
    // Predicated region
    $region6: #{tpu_custom_call.1} parent=1 // pred_check
      _
    $region7: #{tpu_custom_call.1} parent=1 // pred_check_branch
      %12 = sbr.rel (0) target = $region9
    $region8: #{tpu_custom_call.1} parent=1 // pred_region
      _
    $region9: #{tpu_custom_call.1} parent=1 // pred_fallthru
      _
    // Predicated region
    $region10: #{tpu_custom_call.1} parent=1 // pred_check
      _
    $region11: #{tpu_custom_call.1} parent=1 // pred_check_branch
      %14 = sbr.rel (0) target = $region13
    $region12: #{tpu_custom_call.1} parent=1 // pred_region
      _
    $region13: #{tpu_custom_call.1} parent=1 // pred_fallthru
      _
    %v15 = vld [vmem:[%s0] sm:$0xff]
    %v16 = vld [vmem:[%s0 + $0x8] sm:$0xff]
    %v17 = vld [vmem:[%s1] sm:$0xf]
    %v18 = vld [vmem:[%s2] sm:$0xff]
    %v19 = vld [vmem:[%s2 + $0x8] sm:$0xff]
    %21 = vset.pattern.permute.xlu0 0
    %22 = vperm.xlu0 %21, %v18
    %v23 = vpop.permute.xlu0 %22
    %26 = vset.pattern.permute.xlu0 0
    %27 = vperm.xlu0 %26, %v19
    %v28 = vpop.permute.xlu0 %27
    %vm30 = vcmask 31744
    %v32 = vsel %vm30, %v15, 0
    %v35 = vsel %vm30, %v16, 0
    %vm37 = vcmask 1043456
    %v39 = vsel %vm37, %v17, 0
    %41 = vmatprep.subr.mxu0 0.0
    %42 = vmatpush1.msra.mxu0 %v39
    %43 = vmatprep.subr.mxu0 0.0
    %44 = vmatpush1.msra.mxu0 0.0
    %45 = vmatprep.subr.mxu0 0.0
    %46 = vmatpush1.msra.mxu0 0.0
    %47 = vmatprep.subr.mxu0 0.0
    %48 = vmatpush1.msra.mxu0 0.0
    %49 = vmatprep.subr.mxu0 0.0
    %50 = vmatpush1.msra.mxu0 0.0
    %51 = vmatprep.subr.mxu0 0.0
    %52 = vmatpush1.msra.mxu0 0.0
    %53 = vmatprep.subr.mxu0 0.0
    %54 = vmatpush1.msra.mxu0 0.0
    %55 = vmatprep.subr.mxu0 0.0
    %56 = vmatpush1.msra.mxu0 0.0
    %57 = vmatprep.subr.mxu0 0.0
    %58 = vmatpush1.msra.mxu0 0.0
    %59 = vmatprep.subr.mxu0 0.0
    %60 = vmatpush1.msra.mxu0 0.0
    %61 = vmatprep.subr.mxu0 0.0
    %62 = vmatpush1.msra.mxu0 0.0
    %63 = vmatprep.subr.mxu0 0.0
    %64 = vmatpush1.msra.mxu0 0.0
    %65 = vmatprep.subr.mxu0 0.0
    %66 = vmatpush1.msra.mxu0 0.0
    %67 = vmatprep.subr.mxu0 0.0
    %68 = vmatpush1.msra.mxu0 0.0
    %69 = vmatprep.subr.mxu0 0.0
    %70 = vmatpush1.msra.mxu0 0.0
    %71 = vmatprep.subr.mxu0 0.0
    %72 = vmatpush1.msra.mxu0 0.0
    %73 = vmatprep.subr.mxu0 0.0
    %74 = vmatpush1.msra.mxu0 0.0
    %75 = vmatprep.subr.mxu0 0.0
    %76 = vmatpush1.msra.mxu0 0.0
    %77 = vmatprep.subr.mxu0 0.0
    %78 = vmatpush1.msra.mxu0 0.0
    %79 = vmatprep.subr.mxu0 0.0
    %80 = vmatpush1.msra.mxu0 0.0
    %81 = vmatprep.subr.mxu0 0.0
    %82 = vmatpush1.msra.mxu0 0.0
    %83 = vmatprep.subr.mxu0 0.0
    %84 = vmatpush1.msra.mxu0 0.0
    %85 = vmatprep.subr.mxu0 0.0
    %86 = vmatpush1.msra.mxu0 0.0
    %87 = vmatprep.subr.mxu0 0.0
    %88 = vmatpush1.msra.mxu0 0.0
    %89 = vmatprep.subr.mxu0 0.0
    %90 = vmatpush1.msra.mxu0 0.0
    %91 = vmatprep.subr.mxu0 0.0
    %92 = vmatpush1.msra.mxu0 0.0
    %93 = vmatprep.subr.mxu0 0.0
    %94 = vmatpush1.msra.mxu0 0.0
    %95 = vmatprep.subr.mxu0 0.0
    %96 = vmatpush1.msra.mxu0 0.0
    %97 = vmatprep.subr.mxu0 0.0
    %98 = vmatpush1.msra.mxu0 0.0
    %99 = vmatprep.subr.mxu0 0.0
    %100 = vmatpush1.msra.mxu0 0.0
    %101 = vmatprep.subr.mxu0 0.0
    %102 = vmatpush1.msra.mxu0 0.0
    %103 = vmatprep.subr.mxu0 0.0
    %104 = vmatpush1.msra.mxu0 0.0
    %105 = vmatprep.mubr.f32.mxu0 0.0
    %106 = vmatmul.mubr.f32.gmra.mrb[0].mxu0 %v32
    %v107 = vpop.f32.mrb[0].mxu0
    %v108 = vadd.f32 %v23, %v107
    %v109 = vpop.f32.mrb[0].mxu0
    %110 = vmatprep.mubr.f32.mxu0 0.0
    %111 = vmatmul.mubr.f32.gmra.mrb[0].mxu0 %v35
    %v112 = vpop.f32.mrb[0].mxu0
    %v113 = vadd.f32 %v28, %v112
    %v114 = vpop.f32.mrb[0].mxu0
    %115 = vdwg.mxu0
    %vm116 = vcmask 523264
    %117 = vst.msk [vmem:[#allocation2] sm:$0xff] %vm116, %v108
    %118 = vst.msk [vmem:[#allocation2 + $0x8] sm:$0xff] %vm116, %v113
    // Predicated region
    $region14: #{tpu_custom_call.1} parent=1 // pred_check
      _
    $region15: #{tpu_custom_call.1} parent=1 // pred_check_branch
      %120 = sbr.rel (0) target = $region17
    $region16: #{tpu_custom_call.1} parent=1 // pred_region
      %s122 = ssub.s32 256, 256
      %123 = vsyncadd [#allocation3], %s122
      %s124 = sshll.u32 [#allocation2], 4
      %s125 = int_to_ptr.vmem [resolvable:$true] %s124
      %130 = dma.vmem_to_hbm [thread:$0]  %s125, 256, %s3, [#allocation3], 128, 128, 8
    $region17: #{tpu_custom_call.1} parent=1 // pred_fallthru
      _
    // Predicated region
    $region18: #{tpu_custom_call.1} parent=1 // pred_check
      _
    $region19: #{tpu_custom_call.1} parent=1 // pred_check_branch
      %132 = sbr.rel (0) target = $region21
    $region20: #{tpu_custom_call.1} parent=1 // pred_region
      %133 = dma.done [#allocation3], 256
    $region21: #{tpu_custom_call.1} parent=1 // pred_fallthru
      _
    %134 = vsyncpa [#allocation3], 1

</llo_original>
